<compile_context>
chip_gen: v7x
topology: tpu7x:2x2x1
jax: 0.10.0
libtpu: 0.0.40
codegen_flags: <defaults>
</compile_context>

<pallas_src>
import functools
import math

import jax
import jax.numpy as jnp
from jax.experimental import pallas as pl
from jax.experimental.pallas import tpu as pltpu

NEG_SLOPE = 0.8  # LeakyReLU negative slope used by the reference DoubleConv.


# ----------------------------- kernel ---------------------------------------

def _fused_double_conv_kernel(x_ref, m1_ref, b1_ref, m2_ref, b2_ref, o_ref,
                              xh_ref, *, neg_slope):
    """(conv3x3 + LeakyReLU) x 2 on a batch block, all data lane-dense in VMEM.

    x_ref : (NB, H, W*Cinp)        row-packed input block
    m1_ref: (3, W*Cinp, W*Cmid)    per-row-tap banded weights, bf16
    b1_ref: (1, W*Cmid)            packed bias, f32
    m2_ref: (3, W*Cmid, W*Cout)    bf16
    b2_ref: (1, W*Cout)            f32
    o_ref : (NB, H, W*Cout)        row-packed output block
    xh_ref: (NB, H+2, max(W*Cinp, W*Cmid)) f32 halo'd activation scratch
    """
    nb, h, wci = x_ref.shape
    wcm = m1_ref.shape[2]
    wco = m2_ref.shape[2]
    wc_halo = xh_ref.shape[2]

    # Zero the two halo rows (top/bottom of every image). Interior rows are
    # fully overwritten below, so no full-scratch memset is needed.
    zrow = jnp.zeros((nb, 1, wc_halo), jnp.float32)
    xh_ref[:, 0:1, :] = zrow
    xh_ref[:, h + 1:h + 2, :] = zrow

    def conv3x3_lrelu(m_ref, b_ref, wc_in, wc_out):
        # Three accumulating MXU matmuls, one per row tap ky in {-1, 0, +1};
        # each reads a static row-offset window of the halo'd scratch.
        # bf16 operands, f32 accumulation; f32 bias + LeakyReLU epilogue.
        acc = jnp.zeros((nb * h, wc_out), jnp.float32)
        for ky in range(3):  # static Python loop -> unrolled
            lhs = xh_ref[:, ky:ky + h, :wc_in].reshape(nb * h, wc_in)
            acc = acc + jnp.dot(lhs.astype(jnp.bfloat16), m_ref[ky],
                                preferred_element_type=jnp.float32)
        acc = acc + b_ref[...]
        return jnp.where(acc > 0, acc, neg_slope * acc)

    # conv1: stage the input into rows 1..H of the halo'd scratch.
    xh_ref[:, 1:h + 1, :wci] = x_ref[...].astype(jnp.float32)
    a1 = conv3x3_lrelu(m1_ref, b1_ref, wci, wcm)           # (NB*H, W*Cmid) f32

    # conv2: the intermediate activation never leaves VMEM.
    xh_ref[:, 1:h + 1, :wcm] = a1.reshape(nb, h, wcm)
    a2 = conv3x3_lrelu(m2_ref, b2_ref, wcm, wco)           # (NB*H, W*Cout) f32

    o_ref[...] = a2.reshape(nb, h, wco).astype(o_ref.dtype)


# ----------------------------- wrapper ---------------------------------------

def fused_double_conv(x_packed, params, *, H, W, Cin, Cinp, Cmid, Cout,
                      batch_block=None):
    """x_packed: (N, H, W*Cinp) row-packed NHWC input (channels zero-padded)."""
    N = x_packed.shape[0]
    nb = N if batch_block is None else batch_block
    assert N % nb == 0, (N, nb)
    WCin, WCmid, WCout = W * Cinp, W * Cmid, W * Cout
    WCmax = max(WCin, WCmid)

    kernel = functools.partial(_fused_double_conv_kernel, neg_slope=NEG_SLOPE)

    # True conv FLOPs (9*Cin*Cout MACs per output pixel), not banded FLOPs.
    flops = 2 * N * H * W * 9 * (Cin * Cmid + Cmid * Cout)
    bytes_accessed = int(
        x_packed.size * x_packed.dtype.itemsize
        + params["m1"].size * params["m1"].dtype.itemsize
        + params["m2"].size * params["m2"].dtype.itemsize
        + params["b1"].size * params["b1"].dtype.itemsize
        + params["b2"].size * params["b2"].dtype.itemsize
        + N * H * WCout * x_packed.dtype.itemsize)

    return pl.pallas_call(
        kernel,
        out_shape=jax.ShapeDtypeStruct((N, H, WCout), x_packed.dtype),
        grid_spec=pltpu.PrefetchScalarGridSpec(
            num_scalar_prefetch=0,
            grid=(N // nb,),
            in_specs=[
                pl.BlockSpec((nb, H, WCin), lambda n: (n, 0, 0)),
                pl.BlockSpec((3, WCin, WCmid), lambda n: (0, 0, 0)),
                pl.BlockSpec((1, WCmid), lambda n: (0, 0)),
                pl.BlockSpec((3, WCmid, WCout), lambda n: (0, 0, 0)),
                pl.BlockSpec((1, WCout), lambda n: (0, 0)),
            ],
            out_specs=pl.BlockSpec((nb, H, WCout), lambda n: (n, 0, 0)),
            scratch_shapes=[pltpu.VMEM((nb, H + 2, WCmax), jnp.float32)],
        ),
        compiler_params=pltpu.CompilerParams(
            dimension_semantics=("parallel",)),
        cost_estimate=pl.CostEstimate(flops=int(flops), transcendentals=0,
                                      bytes_accessed=bytes_accessed),
    )(x_packed, params["m1"], params["b1"], params["m2"], params["b2"])


def double_conv_forward(x_nchw, params, *, batch_block=None):
    """Matches DoubleConv.forward: conv3x3+LeakyReLU(0.8), conv3x3+LeakyReLU(0.8)."""
    N, Cin, H, W = x_nchw.shape
    Cinp = params["cin_pad"]
    Cmid = params["b1"].size // W
    Cout = params["b2"].size // W
    # NCHW -> row-packed (N, H, W*Cinp). Channels are zero-padded so the conv1
    # LHS lane width is a multiple of 128 (full unmasked vector loads).
    x = jnp.transpose(x_nchw, (0, 2, 3, 1))                      # (N, H, W, Cin)
    if Cinp > Cin:
        x = jnp.pad(x, ((0, 0), (0, 0), (0, 0), (0, Cinp - Cin)))
    x = x.reshape(N, H, W * Cinp)
    y = fused_double_conv(x, params, H=H, W=W, Cin=Cin, Cinp=Cinp, Cmid=Cmid,
                          Cout=Cout, batch_block=batch_block)
    return jnp.transpose(y.reshape(N, H, W, Cout), (0, 3, 1, 2))


# ----------------------- weight packing / init -------------------------------

def _lane_pad_cin(cin, W, lane=128):
    """Smallest Cin' >= Cin such that W*Cin' is a multiple of the 128-lane vreg."""
    step = lane // math.gcd(W, lane)
    return ((cin + step - 1) // step) * step


def _pack_per_tap(w_oihw, W, cin_pad):
    """PyTorch conv weight (Cout, Cin, 3, 3) -> per-row-tap banded matrices
    (3, W*cin_pad, W*Cout) in bf16, acting on row-packed activations."""
    Cout, Cin = w_oihw.shape[0], w_oihw.shape[1]
    wi = jnp.arange(W)[None, :, None]          # input w index
    wo = jnp.arange(W)[None, None, :]          # output w index
    kx = jnp.arange(3)[:, None, None]
    sel = (wi == wo + kx - 1).astype(jnp.float32)                # (3, W, W)
    # m[ky, wi, ci, wo, co] = sum_kx Wt[co, ci, ky, kx] * sel[kx, wi, wo]
    m = jnp.einsum('ocyk,kiw->yicwo', w_oihw.astype(jnp.float32), sel,
                   precision=jax.lax.Precision.HIGHEST)          # (3,W,Cin,W,Cout)
    if cin_pad > Cin:
        m = jnp.pad(m, ((0, 0), (0, 0), (0, cin_pad - Cin), (0, 0), (0, 0)))
    return m.reshape(3, W * cin_pad, W * Cout).astype(jnp.bfloat16)


def _pack_bias(b, W):
    return jnp.tile(b, W).reshape(1, -1).astype(jnp.float32)     # (1, W*Cout)


def init_params(key, in_channels, out_channels, W, dtype=jnp.float32):
    """Deterministic synthetic init (shapes match nn.Conv2d(k=3, padding=1))."""
    k1, k2, k3, k4 = jax.random.split(key, 4)
    w1 = 0.1 * jax.random.normal(k1, (out_channels, in_channels, 3, 3), dtype)
    w2 = 0.1 * jax.random.normal(k2, (out_channels, out_channels, 3, 3), dtype)
    b1 = 0.1 * jax.random.normal(k3, (out_channels,), dtype)
    b2 = 0.1 * jax.random.normal(k4, (out_channels,), dtype)
    cin_pad = _lane_pad_cin(in_channels, W)
    return {
        "cin_pad": cin_pad,
        "m1": _pack_per_tap(w1, W, cin_pad), "b1": _pack_bias(b1, W),
        "m2": _pack_per_tap(w2, W, out_channels), "b2": _pack_bias(b2, W),
        # dense copies kept only for the pure-JAX reference checks below
        "w1": w1, "w2": w2, "b1_raw": b1, "b2_raw": b2,
    }


# ----------------------------- references -------------------------------------

def _reference_double_conv(x_nchw, params):
    """Exact PyTorch semantics (all-f32)."""
    def conv(x, w, b):
        y = jax.lax.conv_general_dilated(
            x, w, window_strides=(1, 1), padding="SAME",
            dimension_numbers=("NCHW", "OIHW", "NCHW"),
            precision=jax.lax.Precision.HIGHEST)
        y = y + b[None, :, None, None]
        return jnp.where(y > 0, y, NEG_SLOPE * y)
    return conv(conv(x_nchw, params["w1"], params["b1_raw"]),
                params["w2"], params["b2_raw"])


def _reference_double_conv_bf16_operands(x_nchw, params):
    """Emulates the kernel's numerics: matmul operands rounded to bf16,
    f32 accumulation, f32 bias + LeakyReLU epilogue."""
    def q(a):
        return a.astype(jnp.bfloat16).astype(jnp.float32)
    def conv(x, w, b):
        y = jax.lax.conv_general_dilated(
            q(x), q(w), window_strides=(1, 1), padding="SAME",
            dimension_numbers=("NCHW", "OIHW", "NCHW"),
            precision=jax.lax.Precision.HIGHEST)
        y = y + b[None, :, None, None]
        return jnp.where(y > 0, y, NEG_SLOPE * y)
    return conv(conv(x_nchw, params["w1"], params["b1_raw"]),
                params["w2"], params["b2_raw"])


if __name__ == "__main__":
    key = jax.random.PRNGKey(0)
    kx, kp = jax.random.split(key)

    # W * Cout = 128 -> lane-dense output slab; Cin padded 4 -> 8 -> 128-lane LHS.
    N, Cin, Cout, H, W = 2, 4, 8, 16, 16
    x = jax.random.normal(kx, (N, Cin, H, W), jnp.float32)   # NCHW, like PyTorch
    params = init_params(kp, Cin, Cout, W)

    out = double_conv_forward(x, params)
    jax.block_until_ready(out)
    assert out.shape == (N, Cout, H, W), out.shape

    # Tight parity check against a reference with the SAME numerics as the
    # kernel (bf16 matmul operands, f32 accumulate/epilogue): remaining
    # differences are only f32 accumulation-order noise.
    ref_bf16 = _reference_double_conv_bf16_operands(x, params)
    err_tight = float(jnp.max(jnp.abs(out - ref_bf16)))
    assert err_tight < 1e-4, f"bf16-operand parity: max abs err {err_tight}"

    # Looser check against exact f32 PyTorch semantics; the gap is the
    # deliberate bf16-operand quantization (expected ~1e-2 at these scales).
    ref_f32 = _reference_double_conv(x, params)
    err_loose = float(jnp.max(jnp.abs(out - ref_f32)))
    assert err_loose < 4e-2, f"f32 reference: max abs err {err_loose}"

    print("KERNEL_OK")
</pallas_src>

<mosaic_0001>
module attributes {stable_mosaic.version = 11 : i64} {
  func.func @_fused_double_conv_kernel(%arg0: i32, %arg1: memref<2x16x128xf32, #tpu.memory_space<vmem>>, %arg2: memref<3x128x128xbf16, #tpu.memory_space<vmem>>, %arg3: memref<1x128xf32, #tpu.memory_space<vmem>>, %arg4: memref<3x128x128xbf16, #tpu.memory_space<vmem>>, %arg5: memref<1x128xf32, #tpu.memory_space<vmem>>, %arg6: memref<2x16x128xf32, #tpu.memory_space<vmem>>, %arg7: memref<2x18x128xf32, #tpu.memory_space<vmem>>) attributes {dimension_semantics = [#tpu.dimension_semantics<parallel>], iteration_bounds = array<i64: 1>, scalar_prefetch = 0 : i64, scratch_operands = 1 : i64, tpu.core_type = #tpu.core_type<tc>, window_params = [{transform_indices = @transform_0, window_bounds = array<i64: 2, 16, 128>}, {pipeline_mode = #tpu.pipeline_mode<synchronous>, transform_indices = @transform_1, window_bounds = array<i64: 3, 128, 128>}, {pipeline_mode = #tpu.pipeline_mode<synchronous>, transform_indices = @transform_2, window_bounds = array<i64: 1, 128>}, {pipeline_mode = #tpu.pipeline_mode<synchronous>, transform_indices = @transform_3, window_bounds = array<i64: 3, 128, 128>}, {pipeline_mode = #tpu.pipeline_mode<synchronous>, transform_indices = @transform_4, window_bounds = array<i64: 1, 128>}, {transform_indices = @transform_5, window_bounds = array<i64: 2, 16, 128>}]} {
    %cst = arith.constant 0.000000e+00 : f32
    %0 = vector.broadcast %cst : f32 to vector<2x1x128xf32>
    %c0 = arith.constant 0 : index
    %c0_0 = arith.constant 0 : index
    %c0_1 = arith.constant 0 : index
    %1 = vector.load %arg7[%c0, %c0_0, %c0_1] : memref<2x18x128xf32, #tpu.memory_space<vmem>>, vector<2x1x128xf32>
    tpu.vector_store %arg7[%c0, %c0_0, %c0_1], %0 {strides = array<i32>} : memref<2x18x128xf32, #tpu.memory_space<vmem>>, vector<2x1x128xf32>,
    %c0_2 = arith.constant 0 : index
    %c17 = arith.constant 17 : index
    %c0_3 = arith.constant 0 : index
    %2 = vector.load %arg7[%c0_2, %c17, %c0_3] : memref<2x18x128xf32, #tpu.memory_space<vmem>>, vector<2x1x128xf32>
    tpu.vector_store %arg7[%c0_2, %c17, %c0_3], %0 {strides = array<i32>} : memref<2x18x128xf32, #tpu.memory_space<vmem>>, vector<2x1x128xf32>,
    %c0_4 = arith.constant 0 : index
    %c0_5 = arith.constant 0 : index
    %c0_6 = arith.constant 0 : index
    %3 = vector.load %arg1[%c0_4, %c0_5, %c0_6] : memref<2x16x128xf32, #tpu.memory_space<vmem>>, vector<2x16x128xf32>
    %c0_7 = arith.constant 0 : index
    %c1 = arith.constant 1 : index
    %c0_8 = arith.constant 0 : index
    %4 = vector.load %arg7[%c0_7, %c1, %c0_8] : memref<2x18x128xf32, #tpu.memory_space<vmem>>, vector<2x16x128xf32>
    tpu.vector_store %arg7[%c0_7, %c1, %c0_8], %3 {strides = array<i32>} : memref<2x18x128xf32, #tpu.memory_space<vmem>>, vector<2x16x128xf32>,
    %cst_9 = arith.constant 0.000000e+00 : f32
    %5 = vector.broadcast %cst_9 : f32 to vector<32x128xf32>
    %c0_10 = arith.constant 0 : index
    %c0_11 = arith.constant 0 : index
    %c0_12 = arith.constant 0 : index
    %6 = vector.load %arg7[%c0_10, %c0_11, %c0_12] : memref<2x18x128xf32, #tpu.memory_space<vmem>>, vector<2x16x128xf32>
    %7 = vector.shape_cast %6 : vector<2x16x128xf32> to vector<32x128xf32>
    %8 = arith.truncf %7 : vector<32x128xf32> to vector<32x128xbf16>
    %c0_13 = arith.constant 0 : index
    %c0_14 = arith.constant 0 : index
    %c0_15 = arith.constant 0 : index
    %9 = vector.load %arg2[%c0_13, %c0_14, %c0_15] : memref<3x128x128xbf16, #tpu.memory_space<vmem>>, vector<1x128x128xbf16>
    %10 = vector.shape_cast %9 : vector<1x128x128xbf16> to vector<128x128xbf16>
    %cst_16 = arith.constant dense<0.000000e+00> : vector<32x128xf32>
    %11 = tpu.matmul %8, %10, %cst_16 {dimension_numbers = #tpu.dot_dimension_numbers<[1], [0], [0], [1], [0, 0, 1, 1], [], []>} : vector<32x128xbf16>, vector<128x128xbf16>, vector<32x128xf32> -> vector<32x128xf32>
    %12 = arith.addf %5, %11 : vector<32x128xf32>
    %c0_17 = arith.constant 0 : index
    %c1_18 = arith.constant 1 : index
    %c0_19 = arith.constant 0 : index
    %13 = vector.load %arg7[%c0_17, %c1_18, %c0_19] : memref<2x18x128xf32, #tpu.memory_space<vmem>>, vector<2x16x128xf32>
    %14 = vector.shape_cast %13 : vector<2x16x128xf32> to vector<32x128xf32>
    %15 = arith.truncf %14 : vector<32x128xf32> to vector<32x128xbf16>
    %c1_20 = arith.constant 1 : index
    %c0_21 = arith.constant 0 : index
    %c0_22 = arith.constant 0 : index
    %16 = vector.load %arg2[%c1_20, %c0_21, %c0_22] : memref<3x128x128xbf16, #tpu.memory_space<vmem>>, vector<1x128x128xbf16>
    %17 = vector.shape_cast %16 : vector<1x128x128xbf16> to vector<128x128xbf16>
    %cst_23 = arith.constant dense<0.000000e+00> : vector<32x128xf32>
    %18 = tpu.matmul %15, %17, %cst_23 {dimension_numbers = #tpu.dot_dimension_numbers<[1], [0], [0], [1], [0, 0, 1, 1], [], []>} : vector<32x128xbf16>, vector<128x128xbf16>, vector<32x128xf32> -> vector<32x128xf32>
    %19 = arith.addf %12, %18 : vector<32x128xf32>
    %c0_24 = arith.constant 0 : index
    %c2 = arith.constant 2 : index
    %c0_25 = arith.constant 0 : index
    %20 = vector.load %arg7[%c0_24, %c2, %c0_25] : memref<2x18x128xf32, #tpu.memory_space<vmem>>, vector<2x16x128xf32>
    %21 = vector.shape_cast %20 : vector<2x16x128xf32> to vector<32x128xf32>
    %22 = arith.truncf %21 : vector<32x128xf32> to vector<32x128xbf16>
    %c2_26 = arith.constant 2 : index
    %c0_27 = arith.constant 0 : index
    %c0_28 = arith.constant 0 : index
    %23 = vector.load %arg2[%c2_26, %c0_27, %c0_28] : memref<3x128x128xbf16, #tpu.memory_space<vmem>>, vector<1x128x128xbf16>
    %24 = vector.shape_cast %23 : vector<1x128x128xbf16> to vector<128x128xbf16>
    %cst_29 = arith.constant dense<0.000000e+00> : vector<32x128xf32>
    %25 = tpu.matmul %22, %24, %cst_29 {dimension_numbers = #tpu.dot_dimension_numbers<[1], [0], [0], [1], [0, 0, 1, 1], [], []>} : vector<32x128xbf16>, vector<128x128xbf16>, vector<32x128xf32> -> vector<32x128xf32>
    %26 = arith.addf %19, %25 : vector<32x128xf32>
    %c0_30 = arith.constant 0 : index
    %c0_31 = arith.constant 0 : index
    %27 = vector.load %arg3[%c0_30, %c0_31] : memref<1x128xf32, #tpu.memory_space<vmem>>, vector<1x128xf32>
    %28 = vector.broadcast %27 : vector<1x128xf32> to vector<32x128xf32>
    %29 = arith.addf %26, %28 : vector<32x128xf32>
    %cst_32 = arith.constant 0.000000e+00 : f32
    %30 = vector.broadcast %cst_32 : f32 to vector<32x128xf32>
    %31 = arith.cmpf ogt, %29, %30 : vector<32x128xf32>
    %cst_33 = arith.constant 8.000000e-01 : f32
    %32 = vector.broadcast %cst_33 : f32 to vector<32x128xf32>
    %33 = arith.mulf %32, %29 : vector<32x128xf32>
    %34 = arith.select %31, %29, %33 : vector<32x128xi1>, vector<32x128xf32>
    %35 = vector.shape_cast %34 : vector<32x128xf32> to vector<2x16x128xf32>
    %c0_34 = arith.constant 0 : index
    %c1_35 = arith.constant 1 : index
    %c0_36 = arith.constant 0 : index
    %36 = vector.load %arg7[%c0_34, %c1_35, %c0_36] : memref<2x18x128xf32, #tpu.memory_space<vmem>>, vector<2x16x128xf32>
    tpu.vector_store %arg7[%c0_34, %c1_35, %c0_36], %35 {strides = array<i32>} : memref<2x18x128xf32, #tpu.memory_space<vmem>>, vector<2x16x128xf32>,
    %cst_37 = arith.constant 0.000000e+00 : f32
    %37 = vector.broadcast %cst_37 : f32 to vector<32x128xf32>
    %c0_38 = arith.constant 0 : index
    %c0_39 = arith.constant 0 : index
    %c0_40 = arith.constant 0 : index
    %38 = vector.load %arg7[%c0_38, %c0_39, %c0_40] : memref<2x18x128xf32, #tpu.memory_space<vmem>>, vector<2x16x128xf32>
    %39 = vector.shape_cast %38 : vector<2x16x128xf32> to vector<32x128xf32>
    %40 = arith.truncf %39 : vector<32x128xf32> to vector<32x128xbf16>
    %c0_41 = arith.constant 0 : index
    %c0_42 = arith.constant 0 : index
    %c0_43 = arith.constant 0 : index
    %41 = vector.load %arg4[%c0_41, %c0_42, %c0_43] : memref<3x128x128xbf16, #tpu.memory_space<vmem>>, vector<1x128x128xbf16>
    %42 = vector.shape_cast %41 : vector<1x128x128xbf16> to vector<128x128xbf16>
    %cst_44 = arith.constant dense<0.000000e+00> : vector<32x128xf32>
    %43 = tpu.matmul %40, %42, %cst_44 {dimension_numbers = #tpu.dot_dimension_numbers<[1], [0], [0], [1], [0, 0, 1, 1], [], []>} : vector<32x128xbf16>, vector<128x128xbf16>, vector<32x128xf32> -> vector<32x128xf32>
    %44 = arith.addf %37, %43 : vector<32x128xf32>
    %c0_45 = arith.constant 0 : index
    %c1_46 = arith.constant 1 : index
    %c0_47 = arith.constant 0 : index
    %45 = vector.load %arg7[%c0_45, %c1_46, %c0_47] : memref<2x18x128xf32, #tpu.memory_space<vmem>>, vector<2x16x128xf32>
    %46 = vector.shape_cast %45 : vector<2x16x128xf32> to vector<32x128xf32>
    %47 = arith.truncf %46 : vector<32x128xf32> to vector<32x128xbf16>
    %c1_48 = arith.constant 1 : index
    %c0_49 = arith.constant 0 : index
    %c0_50 = arith.constant 0 : index
    %48 = vector.load %arg4[%c1_48, %c0_49, %c0_50] : memref<3x128x128xbf16, #tpu.memory_space<vmem>>, vector<1x128x128xbf16>
    %49 = vector.shape_cast %48 : vector<1x128x128xbf16> to vector<128x128xbf16>
    %cst_51 = arith.constant dense<0.000000e+00> : vector<32x128xf32>
    %50 = tpu.matmul %47, %49, %cst_51 {dimension_numbers = #tpu.dot_dimension_numbers<[1], [0], [0], [1], [0, 0, 1, 1], [], []>} : vector<32x128xbf16>, vector<128x128xbf16>, vector<32x128xf32> -> vector<32x128xf32>
    %51 = arith.addf %44, %50 : vector<32x128xf32>
    %c0_52 = arith.constant 0 : index
    %c2_53 = arith.constant 2 : index
    %c0_54 = arith.constant 0 : index
    %52 = vector.load %arg7[%c0_52, %c2_53, %c0_54] : memref<2x18x128xf32, #tpu.memory_space<vmem>>, vector<2x16x128xf32>
    %53 = vector.shape_cast %52 : vector<2x16x128xf32> to vector<32x128xf32>
    %54 = arith.truncf %53 : vector<32x128xf32> to vector<32x128xbf16>
    %c2_55 = arith.constant 2 : index
    %c0_56 = arith.constant 0 : index
    %c0_57 = arith.constant 0 : index
    %55 = vector.load %arg4[%c2_55, %c0_56, %c0_57] : memref<3x128x128xbf16, #tpu.memory_space<vmem>>, vector<1x128x128xbf16>
    %56 = vector.shape_cast %55 : vector<1x128x128xbf16> to vector<128x128xbf16>
    %cst_58 = arith.constant dense<0.000000e+00> : vector<32x128xf32>
    %57 = tpu.matmul %54, %56, %cst_58 {dimension_numbers = #tpu.dot_dimension_numbers<[1], [0], [0], [1], [0, 0, 1, 1], [], []>} : vector<32x128xbf16>, vector<128x128xbf16>, vector<32x128xf32> -> vector<32x128xf32>
    %58 = arith.addf %51, %57 : vector<32x128xf32>
    %c0_59 = arith.constant 0 : index
    %c0_60 = arith.constant 0 : index
    %59 = vector.load %arg5[%c0_59, %c0_60] : memref<1x128xf32, #tpu.memory_space<vmem>>, vector<1x128xf32>
    %60 = vector.broadcast %59 : vector<1x128xf32> to vector<32x128xf32>
    %61 = arith.addf %58, %60 : vector<32x128xf32>
    %cst_61 = arith.constant 0.000000e+00 : f32
    %62 = vector.broadcast %cst_61 : f32 to vector<32x128xf32>
    %63 = arith.cmpf ogt, %61, %62 : vector<32x128xf32>
    %cst_62 = arith.constant 8.000000e-01 : f32
    %64 = vector.broadcast %cst_62 : f32 to vector<32x128xf32>
    %65 = arith.mulf %64, %61 : vector<32x128xf32>
    %66 = arith.select %63, %61, %65 : vector<32x128xi1>, vector<32x128xf32>
    %67 = vector.shape_cast %66 : vector<32x128xf32> to vector<2x16x128xf32>
    %c0_63 = arith.constant 0 : index
    %c0_64 = arith.constant 0 : index
    %c0_65 = arith.constant 0 : index
    %68 = vector.load %arg6[%c0_63, %c0_64, %c0_65] : memref<2x16x128xf32, #tpu.memory_space<vmem>>, vector<2x16x128xf32>
    tpu.vector_store %arg6[%c0_63, %c0_64, %c0_65], %67 {strides = array<i32>} : memref<2x16x128xf32, #tpu.memory_space<vmem>>, vector<2x16x128xf32>,
    return
  }
  func.func @transform_0(%arg0: i32) -> (i32, i32, i32) {
    %c0_i32 = arith.constant 0 : i32
    %c0_i32_0 = arith.constant 0 : i32
    %c0_i32_1 = arith.constant 0 : i32
    return %arg0, %c0_i32, %c0_i32_0 : i32, i32, i32
  }
  func.func @transform_1(%arg0: i32) -> (i32, i32, i32) {
    %c0_i32 = arith.constant 0 : i32
    %c0_i32_0 = arith.constant 0 : i32
    %c0_i32_1 = arith.constant 0 : i32
    %c0_i32_2 = arith.constant 0 : i32
    return %c0_i32, %c0_i32_0, %c0_i32_1 : i32, i32, i32
  }
  func.func @transform_2(%arg0: i32) -> (i32, i32) {
    %c0_i32 = arith.constant 0 : i32
    %c0_i32_0 = arith.constant 0 : i32
    %c0_i32_1 = arith.constant 0 : i32
    return %c0_i32, %c0_i32_0 : i32, i32
  }
  func.func @transform_3(%arg0: i32) -> (i32, i32, i32) {
    %c0_i32 = arith.constant 0 : i32
    %c0_i32_0 = arith.constant 0 : i32
    %c0_i32_1 = arith.constant 0 : i32
    %c0_i32_2 = arith.constant 0 : i32
    return %c0_i32, %c0_i32_0, %c0_i32_1 : i32, i32, i32
  }
  func.func @transform_4(%arg0: i32) -> (i32, i32) {
    %c0_i32 = arith.constant 0 : i32
    %c0_i32_0 = arith.constant 0 : i32
    %c0_i32_1 = arith.constant 0 : i32
    return %c0_i32, %c0_i32_0 : i32, i32
  }
  func.func @transform_5(%arg0: i32) -> (i32, i32, i32) {
    %c0_i32 = arith.constant 0 : i32
    %c0_i32_0 = arith.constant 0 : i32
    %c0_i32_1 = arith.constant 0 : i32
    return %arg0, %c0_i32, %c0_i32_0 : i32, i32, i32
  }
}

</mosaic_0001>

<llo_original>
// kernel: tpu_custom_call.1
$region0: #{tpu_custom_call.1}
  #allocation0 [shape = 'u32[]', space=smem, size = 0x4, offset = 0x4, fixed_abs, tag = 'smem constant byte address 0x4 - core index']
  #allocation1 [shape = 'u32[144,128]{1,0:T(1,128)}', space=vmem, size = 0x12000, scoped, tag = 'internal scratch']
  #allocation2 [shape = 'f32[2,18,128]{2,1,0:T(8,128)}', space=vmem, size = 0x6000, scoped, tag = 'scratch operand']
  %s0 = inlined_call_operand.hbm [shape: f32[2,16,128], index: 0, kind: input, shape index: {}]
  %s1 = inlined_call_operand.hbm [shape: bf16[3,128,128], index: 1, kind: input, shape index: {}]
  %s2 = inlined_call_operand.vmem [shape: f32[1,128], index: 2, kind: input, shape index: {}]
  %s3 = inlined_call_operand.hbm [shape: bf16[3,128,128], index: 3, kind: input, shape index: {}]
  %s4 = inlined_call_operand.vmem [shape: f32[1,128], index: 4, kind: input, shape index: {}]
  %s5 = inlined_call_operand.hbm [shape: f32[2,16,128], index: 5, kind: output, shape index: {}]
  %s6 = sld [smem:[#allocation0]]
  $region42: #{tpu_custom_call.1} parent=0
    _
  %s8 = ssub.s32 1, %s6
  %s9 = scalar_select 0, %s8, %s6
  $region1: #{tpu_custom_call.1} parent=0
    #allocation3 [shape = 'u8[16384]{0}', space=vmem, size = 0x4000, scoped, tag = 'input window, operand 0, single buffered']
    #allocation4 [shape = 's32[1]{0}', space=sflag, size = 0x4, scoped, tag = 'scoped memory for tpu_custom_call.1']
    #allocation5 [shape = 's32[1]{0}', space=sflag, size = 0x4, scoped, tag = 'scoped memory for tpu_custom_call.1']
    #allocation6 [shape = 'u8[98304]{0}', space=vmem, size = 0x18000, scoped, tag = 'input window, operand 1, single buffered']
    #allocation7 [shape = 's32[1]{0}', space=sflag, size = 0x4, scoped, tag = 'scoped memory for tpu_custom_call.1']
    #allocation8 [shape = 'u8[98304]{0}', space=vmem, size = 0x18000, scoped, tag = 'input window, operand 3, single buffered']
    #allocation9 [shape = 'u8[16384]{0}', space=vmem, size = 0x4000, scoped, tag = 'output window, operand 0, single buffered']
    %10 = vsyncpa [#allocation4], 0
    %11 = vsyncpa [#allocation7], 0
    %12 = vsyncpa [#allocation5], 0
    // Predicated region
    $region2: #{tpu_custom_call.1} parent=1 // pred_check
      _
    $region3: #{tpu_custom_call.1} parent=1 // pred_check_branch
      %14 = sbr.rel (0) target = $region5
    $region4: #{tpu_custom_call.1} parent=1 // pred_region
      %s16 = ssub.s32 512, 512
      %17 = vsyncadd [#allocation4], %s16
      %s18 = sshll.u32 [#allocation3], 4
      %s19 = int_to_ptr.vmem [resolvable:$true] %s18
      %24 = dma.hbm_to_vmem [thread:$0]  %s0, 512, %s19, [#allocation4], 128, 128, 8
    $region5: #{tpu_custom_call.1} parent=1 // pred_fallthru
      _
    // Predicated region
    $region6: #{tpu_custom_call.1} parent=1 // pred_check
      _
    $region7: #{tpu_custom_call.1} parent=1 // pred_check_branch
      %26 = sbr.rel (0) target = $region9
    $region8: #{tpu_custom_call.1} parent=1 // pred_region
      %s28 = ssub.s32 3072, 3072
      %29 = vsyncadd [#allocation7], %s28
      %s30 = sshll.u32 [#allocation6], 4
      %s31 = int_to_ptr.vmem [resolvable:$true] %s30
      %36 = dma.hbm_to_vmem [thread:$0]  %s1, 3072, %s31, [#allocation7], 64, 64, 4
    $region9: #{tpu_custom_call.1} parent=1 // pred_fallthru
      _
    // Predicated region
    $region10: #{tpu_custom_call.1} parent=1 // pred_check
      _
    $region11: #{tpu_custom_call.1} parent=1 // pred_check_branch
      %38 = sbr.rel (0) target = $region13
    $region12: #{tpu_custom_call.1} parent=1 // pred_region
      _
    $region13: #{tpu_custom_call.1} parent=1 // pred_fallthru
      _
    // Predicated region
    $region14: #{tpu_custom_call.1} parent=1 // pred_check
      _
    $region15: #{tpu_custom_call.1} parent=1 // pred_check_branch
      %40 = sbr.rel (0) target = $region17
    $region16: #{tpu_custom_call.1} parent=1 // pred_region
      %s42 = ssub.s32 3072, 3072
      %43 = vsyncadd [#allocation7], %s42
      %s44 = sshll.u32 [#allocation8], 4
      %s45 = int_to_ptr.vmem [resolvable:$true] %s44
      %50 = dma.hbm_to_vmem [thread:$0]  %s3, 3072, %s45, [#allocation7], 64, 64, 4
    $region17: #{tpu_custom_call.1} parent=1 // pred_fallthru
      _
    // Predicated region
    $region18: #{tpu_custom_call.1} parent=1 // pred_check
      _
    $region19: #{tpu_custom_call.1} parent=1 // pred_check_branch
      %52 = sbr.rel (0) target = $region21
    $region20: #{tpu_custom_call.1} parent=1 // pred_region
      _
    $region21: #{tpu_custom_call.1} parent=1 // pred_fallthru
      _
    // Predicated region
    $region22: #{tpu_custom_call.1} parent=1 // pred_check
      _
    $region23: #{tpu_custom_call.1} parent=1 // pred_check_branch
      %54 = sbr.rel (0) target = $region25
    $region24: #{tpu_custom_call.1} parent=1 // pred_region
      %55 = dma.done [#allocation4], 512
    $region25: #{tpu_custom_call.1} parent=1 // pred_fallthru
      _
    // Predicated region
    $region26: #{tpu_custom_call.1} parent=1 // pred_check
      _
    $region27: #{tpu_custom_call.1} parent=1 // pred_check_branch
      %57 = sbr.rel (0) target = $region29
    $region28: #{tpu_custom_call.1} parent=1 // pred_region
      %58 = dma.done [#allocation7], 3072
    $region29: #{tpu_custom_call.1} parent=1 // pred_fallthru
      _
    // Predicated region
    $region30: #{tpu_custom_call.1} parent=1 // pred_check
      _
    $region31: #{tpu_custom_call.1} parent=1 // pred_check_branch
      %60 = sbr.rel (0) target = $region33
    $region32: #{tpu_custom_call.1} parent=1 // pred_region
      %61 = dma.done [#allocation7], 3072
    $region33: #{tpu_custom_call.1} parent=1 // pred_fallthru
      _
    %63 = vst [vmem:[#allocation2] sm:$0x1] 0.0
    %64 = vst [vmem:[#allocation2 + $0x18] sm:$0x1] 0.0
    %65 = vst [vmem:[#allocation2 + $0x11] sm:$0x1] 0.0
    %66 = vst [vmem:[#allocation2 + $0x29] sm:$0x1] 0.0
    %v67 = vld [vmem:[#allocation3] sm:$0xff]
    %v68 = vld [vmem:[#allocation3 + $0x8] sm:$0xff]
    %v69 = vld [vmem:[#allocation3 + $0x10] sm:$0xff]
    %v70 = vld [vmem:[#allocation3 + $0x18] sm:$0xff]
    %71 = vst [vmem:[#allocation2 + $0x1] sm:$0xff] %v67
    %72 = vst [vmem:[#allocation2 + $0x9] sm:$0xff] %v68
    %73 = vst [vmem:[#allocation2 + $0x19] sm:$0xff] %v69
    %74 = vst [vmem:[#allocation2 + $0x21] sm:$0xff] %v70
    %v75 = vld [vmem:[#allocation2] sm:$0xff]
    %v76 = vld [vmem:[#allocation2 + $0x8] sm:$0xff]
    %v77 = vld [vmem:[#allocation2 + $0x18] sm:$0xff]
    %v78 = vld [vmem:[#allocation2 + $0x20] sm:$0xff]
    %v79 = vpack.c.bf16 %v76, %v75
    %v80 = vpack.c.bf16 %v78, %v77
    %v81 = vld [vmem:[#allocation6] sm:$0xf]
    %v82 = vld [vmem:[#allocation6 + $0x4] sm:$0xf]
    %v83 = vld [vmem:[#allocation6 + $0x8] sm:$0xf]
    %v84 = vld [vmem:[#allocation6 + $0xc] sm:$0xf]
    %v85 = vld [vmem:[#allocation6 + $0x10] sm:$0xf]
    %v86 = vld [vmem:[#allocation6 + $0x14] sm:$0xf]
    %v87 = vld [vmem:[#allocation6 + $0x18] sm:$0xf]
    %v88 = vld [vmem:[#allocation6 + $0x1c] sm:$0xf]
    %v89 = vld [vmem:[#allocation6 + $0x20] sm:$0xf]
    %v90 = vld [vmem:[#allocation6 + $0x24] sm:$0xf]
    %v91 = vld [vmem:[#allocation6 + $0x28] sm:$0xf]
    %v92 = vld [vmem:[#allocation6 + $0x2c] sm:$0xf]
    %v93 = vld [vmem:[#allocation6 + $0x30] sm:$0xf]
    %v94 = vld [vmem:[#allocation6 + $0x34] sm:$0xf]
    %v95 = vld [vmem:[#allocation6 + $0x38] sm:$0xf]
    %v96 = vld [vmem:[#allocation6 + $0x3c] sm:$0xf]
    %v97 = vld [vmem:[#allocation2 + $0x1] sm:$0xff]
    %v98 = vld [vmem:[#allocation2 + $0x9] sm:$0xff]
    %v99 = vld [vmem:[#allocation2 + $0x19] sm:$0xff]
    %v100 = vld [vmem:[#allocation2 + $0x21] sm:$0xff]
    %v101 = vpack.c.bf16 %v98, %v97
    %v102 = vpack.c.bf16 %v100, %v99
    %s103 = scalar_lea.vmem [#allocation6], 64
    %v104 = vld [vmem:[%s103] sm:$0xf]
    %v105 = vld [vmem:[%s103 + $0x4] sm:$0xf]
    %v106 = vld [vmem:[%s103 + $0x8] sm:$0xf]
    %v107 = vld [vmem:[%s103 + $0xc] sm:$0xf]
    %v108 = vld [vmem:[%s103 + $0x10] sm:$0xf]
    %v109 = vld [vmem:[%s103 + $0x14] sm:$0xf]
    %v110 = vld [vmem:[%s103 + $0x18] sm:$0xf]
    %v111 = vld [vmem:[%s103 + $0x1c] sm:$0xf]
    %v112 = vld [vmem:[%s103 + $0x20] sm:$0xf]
    %v113 = vld [vmem:[%s103 + $0x24] sm:$0xf]
    %v114 = vld [vmem:[%s103 + $0x28] sm:$0xf]
    %v115 = vld [vmem:[%s103 + $0x2c] sm:$0xf]
    %v116 = vld [vmem:[%s103 + $0x30] sm:$0xf]
    %v117 = vld [vmem:[%s103 + $0x34] sm:$0xf]
    %v118 = vld [vmem:[%s103 + $0x38] sm:$0xf]
    %v119 = vld [vmem:[%s103 + $0x3c] sm:$0xf]
    %v136 = vunpack.c.l.b16 %v104
    %v137 = vunpack.c.l.b16 %v105
    %v138 = vunpack.c.l.b16 %v106
    %v139 = vunpack.c.l.b16 %v107
    %v140 = vunpack.c.l.b16 %v108
    %v141 = vunpack.c.l.b16 %v109
    %v142 = vunpack.c.l.b16 %v110
    %v143 = vunpack.c.l.b16 %v111
    %v144 = vunpack.c.l.b16 %v112
    %v145 = vunpack.c.l.b16 %v113
    %v146 = vunpack.c.l.b16 %v114
    %v147 = vunpack.c.l.b16 %v115
    %v148 = vunpack.c.l.b16 %v116
    %v149 = vunpack.c.l.b16 %v117
    %v150 = vunpack.c.l.b16 %v118
    %v151 = vunpack.c.l.b16 %v119
    %v152 = vpack.c.b16 %v137, %v136
    %v153 = vpack.c.b16 %v139, %v138
    %v154 = vpack.c.b16 %v141, %v140
    %v155 = vpack.c.b16 %v143, %v142
    %v156 = vpack.c.b16 %v145, %v144
    %v157 = vpack.c.b16 %v147, %v146
    %v158 = vpack.c.b16 %v149, %v148
    %v159 = vpack.c.b16 %v151, %v150
    %168 = vmatprep.subr.bf16.mxu0 0
    %169 = vmatpush1.bf16.msra.mxu0 %v152
    %170 = vmatprep.subr.bf16.mxu0 0
    %171 = vmatpush1.bf16.msra.mxu0 %v153
    %172 = vmatprep.subr.bf16.mxu0 0
    %173 = vmatpush1.bf16.msra.mxu0 %v154
    %174 = vmatprep.subr.bf16.mxu0 0
    %175 = vmatpush1.bf16.msra.mxu0 %v155
    %176 = vmatprep.subr.bf16.mxu0 0
    %177 = vmatpush1.bf16.msra.mxu0 %v156
    %178 = vmatprep.subr.bf16.mxu0 0
    %179 = vmatpush1.bf16.msra.mxu0 %v157
    %180 = vmatprep.subr.bf16.mxu0 0
    %181 = vmatpush1.bf16.msra.mxu0 %v158
    %182 = vmatprep.subr.bf16.mxu0 0
    %183 = vmatpush1.bf16.msra.mxu0 %v159
    %184 = vmatprep.subr.bf16.mxu0 0
    %185 = vmatpush1.bf16.msra.mxu0 0
    %186 = vmatprep.subr.bf16.mxu0 0
    %187 = vmatpush1.bf16.msra.mxu0 0
    %188 = vmatprep.subr.bf16.mxu0 0
    %189 = vmatpush1.bf16.msra.mxu0 0
    %190 = vmatprep.subr.bf16.mxu0 0
    %191 = vmatpush1.bf16.msra.mxu0 0
    %192 = vmatprep.subr.bf16.mxu0 0
    %193 = vmatpush1.bf16.msra.mxu0 0
    %194 = vmatprep.subr.bf16.mxu0 0
    %195 = vmatpush1.bf16.msra.mxu0 0
    %196 = vmatprep.subr.bf16.mxu0 0
    %197 = vmatpush1.bf16.msra.mxu0 0
    %198 = vmatprep.subr.bf16.mxu0 0
    %199 = vmatpush1.bf16.msra.mxu0 0
    %200 = vmatprep.mubr.bf16.mxu0 0
    %201 = vmatmul.mubr.bf16.gmra.mrb[0].mxu0 %v101
    %v202 = vpop.f32.mrb[0].mxu0
    %v203 = vadd.f32 0.0, %v202
    %v204 = vpop.f32.mrb[0].mxu0
    %v205 = vpop.f32.mrb[0].mxu0
    %v206 = vadd.f32 0.0, %v205
    %v207 = vpop.f32.mrb[0].mxu0
    %208 = vmatprep.mubr.bf16.mxu0 0
    %209 = vmatmul.mubr.bf16.gmra.mrb[0].mxu0 %v102
    %v210 = vpop.f32.mrb[0].mxu0
    %v211 = vadd.f32 0.0, %v210
    %v212 = vpop.f32.mrb[0].mxu0
    %v213 = vpop.f32.mrb[0].mxu0
    %v214 = vadd.f32 0.0, %v213
    %v215 = vpop.f32.mrb[0].mxu0
    %216 = vdwg.mxu0
    %v233 = vunpack.c.l.b16 %v81
    %v234 = vunpack.c.l.b16 %v82
    %v235 = vunpack.c.l.b16 %v83
    %v236 = vunpack.c.l.b16 %v84
    %v237 = vunpack.c.l.b16 %v85
    %v238 = vunpack.c.l.b16 %v86
    %v239 = vunpack.c.l.b16 %v87
    %v240 = vunpack.c.l.b16 %v88
    %v241 = vunpack.c.l.b16 %v89
    %v242 = vunpack.c.l.b16 %v90
    %v243 = vunpack.c.l.b16 %v91
    %v244 = vunpack.c.l.b16 %v92
    %v245 = vunpack.c.l.b16 %v93
    %v246 = vunpack.c.l.b16 %v94
    %v247 = vunpack.c.l.b16 %v95
    %v248 = vunpack.c.l.b16 %v96
    %v249 = vpack.c.b16 %v234, %v233
    %v250 = vpack.c.b16 %v236, %v235
    %v251 = vpack.c.b16 %v238, %v237
    %v252 = vpack.c.b16 %v240, %v239
    %v253 = vpack.c.b16 %v242, %v241
    %v254 = vpack.c.b16 %v244, %v243
    %v255 = vpack.c.b16 %v246, %v245
    %v256 = vpack.c.b16 %v248, %v247
    %265 = vmatprep.subr.bf16.mxu0 0
    %266 = vmatpush1.bf16.msra.mxu0 %v249
    %267 = vmatprep.subr.bf16.mxu0 0
    %268 = vmatpush1.bf16.msra.mxu0 %v250
    %269 = vmatprep.subr.bf16.mxu0 0
    %270 = vmatpush1.bf16.msra.mxu0 %v251
    %271 = vmatprep.subr.bf16.mxu0 0
    %272 = vmatpush1.bf16.msra.mxu0 %v252
    %273 = vmatprep.subr.bf16.mxu0 0
    %274 = vmatpush1.bf16.msra.mxu0 %v253
    %275 = vmatprep.subr.bf16.mxu0 0
    %276 = vmatpush1.bf16.msra.mxu0 %v254
    %277 = vmatprep.subr.bf16.mxu0 0
    %278 = vmatpush1.bf16.msra.mxu0 %v255
    %279 = vmatprep.subr.bf16.mxu0 0
    %280 = vmatpush1.bf16.msra.mxu0 %v256
    %281 = vmatprep.subr.bf16.mxu0 0
    %282 = vmatpush1.bf16.msra.mxu0 0
    %283 = vmatprep.subr.bf16.mxu0 0
    %284 = vmatpush1.bf16.msra.mxu0 0
    %285 = vmatprep.subr.bf16.mxu0 0
    %286 = vmatpush1.bf16.msra.mxu0 0
    %287 = vmatprep.subr.bf16.mxu0 0
    %288 = vmatpush1.bf16.msra.mxu0 0
    %289 = vmatprep.subr.bf16.mxu0 0
    %290 = vmatpush1.bf16.msra.mxu0 0
    %291 = vmatprep.subr.bf16.mxu0 0
    %292 = vmatpush1.bf16.msra.mxu0 0
    %293 = vmatprep.subr.bf16.mxu0 0
    %294 = vmatpush1.bf16.msra.mxu0 0
    %295 = vmatprep.subr.bf16.mxu0 0
    %296 = vmatpush1.bf16.msra.mxu0 0
    %297 = vmatprep.mubr.bf16.mxu0 0
    %298 = vmatmul.mubr.bf16.gmra.mrb[0].mxu0 %v79
    %v299 = vpop.f32.mrb[0].mxu0
    %v300 = vadd.f32 %v203, %v299
    %v301 = vpop.f32.mrb[0].mxu0
    %v302 = vpop.f32.mrb[0].mxu0
    %v303 = vadd.f32 %v206, %v302
    %v304 = vpop.f32.mrb[0].mxu0
    %305 = vmatprep.mubr.bf16.mxu0 0
    %306 = vmatmul.mubr.bf16.gmra.mrb[0].mxu0 %v80
    %v307 = vpop.f32.mrb[0].mxu0
    %v308 = vadd.f32 %v211, %v307
    %v309 = vpop.f32.mrb[0].mxu0
    %v310 = vpop.f32.mrb[0].mxu0
    %v311 = vadd.f32 %v214, %v310
    %v312 = vpop.f32.mrb[0].mxu0
    %313 = vdwg.mxu0
    %v314 = vld [vmem:[#allocation2 + $0x2] sm:$0xff]
    %v315 = vld [vmem:[#allocation2 + $0xa] sm:$0xff]
    %v316 = vld [vmem:[#allocation2 + $0x1a] sm:$0xff]
    %v317 = vld [vmem:[#allocation2 + $0x22] sm:$0xff]
    %v318 = vpack.c.bf16 %v315, %v314
    %v319 = vpack.c.bf16 %v317, %v316
    %s320 = scalar_lea.vmem [#allocation6], 128
    %v321 = vld [vmem:[%s320] sm:$0xf]
    %v322 = vld [vmem:[%s320 + $0x4] sm:$0xf]
    %v323 = vld [vmem:[%s320 + $0x8] sm:$0xf]
    %v324 = vld [vmem:[%s320 + $0xc] sm:$0xf]
    %v325 = vld [vmem:[%s320 + $0x10] sm:$0xf]
    %v326 = vld [vmem:[%s320 + $0x14] sm:$0xf]
    %v327 = vld [vmem:[%s320 + $0x18] sm:$0xf]
    %v328 = vld [vmem:[%s320 + $0x1c] sm:$0xf]
    %v329 = vld [vmem:[%s320 + $0x20] sm:$0xf]
    %v330 = vld [vmem:[%s320 + $0x24] sm:$0xf]
    %v331 = vld [vmem:[%s320 + $0x28] sm:$0xf]
    %v332 = vld [vmem:[%s320 + $0x2c] sm:$0xf]
    %v333 = vld [vmem:[%s320 + $0x30] sm:$0xf]
    %v334 = vld [vmem:[%s320 + $0x34] sm:$0xf]
    %v335 = vld [vmem:[%s320 + $0x38] sm:$0xf]
    %v336 = vld [vmem:[%s320 + $0x3c] sm:$0xf]
    %v353 = vunpack.c.l.b16 %v321
    %v354 = vunpack.c.l.b16 %v322
    %v355 = vunpack.c.l.b16 %v323
    %v356 = vunpack.c.l.b16 %v324
    %v357 = vunpack.c.l.b16 %v325
    %v358 = vunpack.c.l.b16 %v326
    %v359 = vunpack.c.l.b16 %v327
    %v360 = vunpack.c.l.b16 %v328
    %v361 = vunpack.c.l.b16 %v329
    %v362 = vunpack.c.l.b16 %v330
    %v363 = vunpack.c.l.b16 %v331
    %v364 = vunpack.c.l.b16 %v332
    %v365 = vunpack.c.l.b16 %v333
    %v366 = vunpack.c.l.b16 %v334
    %v367 = vunpack.c.l.b16 %v335
    %v368 = vunpack.c.l.b16 %v336
    %v369 = vpack.c.b16 %v354, %v353
    %v370 = vpack.c.b16 %v356, %v355
    %v371 = vpack.c.b16 %v358, %v357
    %v372 = vpack.c.b16 %v360, %v359
    %v373 = vpack.c.b16 %v362, %v361
    %v374 = vpack.c.b16 %v364, %v363
    %v375 = vpack.c.b16 %v366, %v365
    %v376 = vpack.c.b16 %v368, %v367
    %385 = vmatprep.subr.bf16.mxu0 0
    %386 = vmatpush1.bf16.msra.mxu0 %v369
    %387 = vmatprep.subr.bf16.mxu0 0
    %388 = vmatpush1.bf16.msra.mxu0 %v370
    %389 = vmatprep.subr.bf16.mxu0 0
    %390 = vmatpush1.bf16.msra.mxu0 %v371
    %391 = vmatprep.subr.bf16.mxu0 0
    %392 = vmatpush1.bf16.msra.mxu0 %v372
    %393 = vmatprep.subr.bf16.mxu0 0
    %394 = vmatpush1.bf16.msra.mxu0 %v373
    %395 = vmatprep.subr.bf16.mxu0 0
    %396 = vmatpush1.bf16.msra.mxu0 %v374
    %397 = vmatprep.subr.bf16.mxu0 0
    %398 = vmatpush1.bf16.msra.mxu0 %v375
    %399 = vmatprep.subr.bf16.mxu0 0
    %400 = vmatpush1.bf16.msra.mxu0 %v376
    %401 = vmatprep.subr.bf16.mxu0 0
    %402 = vmatpush1.bf16.msra.mxu0 0
    %403 = vmatprep.subr.bf16.mxu0 0
    %404 = vmatpush1.bf16.msra.mxu0 0
    %405 = vmatprep.subr.bf16.mxu0 0
    %406 = vmatpush1.bf16.msra.mxu0 0
    %407 = vmatprep.subr.bf16.mxu0 0
    %408 = vmatpush1.bf16.msra.mxu0 0
    %409 = vmatprep.subr.bf16.mxu0 0
    %410 = vmatpush1.bf16.msra.mxu0 0
    %411 = vmatprep.subr.bf16.mxu0 0
    %412 = vmatpush1.bf16.msra.mxu0 0
    %413 = vmatprep.subr.bf16.mxu0 0
    %414 = vmatpush1.bf16.msra.mxu0 0
    %415 = vmatprep.subr.bf16.mxu0 0
    %416 = vmatpush1.bf16.msra.mxu0 0
    %417 = vmatprep.mubr.bf16.mxu0 0
    %418 = vmatmul.mubr.bf16.gmra.mrb[0].mxu0 %v318
    %v419 = vpop.f32.mrb[0].mxu0
    %v420 = vadd.f32 0.0, %v419
    %v421 = vpop.f32.mrb[0].mxu0
    %v422 = vpop.f32.mrb[0].mxu0
    %v423 = vadd.f32 0.0, %v422
    %v424 = vpop.f32.mrb[0].mxu0
    %425 = vmatprep.mubr.bf16.mxu0 0
    %426 = vmatmul.mubr.bf16.gmra.mrb[0].mxu0 %v319
    %v427 = vpop.f32.mrb[0].mxu0
    %v428 = vadd.f32 0.0, %v427
    %v429 = vpop.f32.mrb[0].mxu0
    %v430 = vpop.f32.mrb[0].mxu0
    %v431 = vadd.f32 0.0, %v430
    %v432 = vpop.f32.mrb[0].mxu0
    %433 = vdwg.mxu0
    %v434 = vadd.f32 %v300, %v420
    %v435 = vadd.f32 %v303, %v423
    %v436 = vadd.f32 %v308, %v428
    %v437 = vadd.f32 %v311, %v431
    %v438 = vld [vmem:[%s2] sm:$0x1]
    %v440 = vlaneseq
    %v441 = vshrl.u32 %v440, 7
    %v442 = vsub.s32 0, %v441
    %v443 = vrot.slane %v438, %v442
    %v445 = vadd.f32 %v434, %v443
    %v446 = vadd.f32 %v435, %v443
    %v447 = vadd.f32 %v436, %v443
    %v448 = vadd.f32 %v437, %v443
    %vm449 = vcmp.gt.f32.partialorder %v445, 0.0
    %vm450 = vcmp.gt.f32.partialorder %v446, 0.0
    %vm451 = vcmp.gt.f32.partialorder %v447, 0.0
    %vm452 = vcmp.gt.f32.partialorder %v448, 0.0
    %v453 = vmul.f32 %v445, 0.8
    %v454 = vmul.f32 %v446, 0.8
    %v455 = vmul.f32 %v447, 0.8
    %v456 = vmul.f32 %v448, 0.8
    %v457 = vsel %vm449, %v445, %v453
    %v458 = vsel %vm450, %v446, %v454
    %v459 = vsel %vm451, %v447, %v455
    %v460 = vsel %vm452, %v448, %v456
    %461 = vst [vmem:[#allocation2 + $0x1] sm:$0xff] %v457
    %462 = vst [vmem:[#allocation2 + $0x9] sm:$0xff] %v458
    %463 = vst [vmem:[#allocation2 + $0x19] sm:$0xff] %v459
    %464 = vst [vmem:[#allocation2 + $0x21] sm:$0xff] %v460
    %v465 = vld [vmem:[#allocation2] sm:$0xff]
    %v466 = vld [vmem:[#allocation2 + $0x8] sm:$0xff]
    %v467 = vld [vmem:[#allocation2 + $0x18] sm:$0xff]
    %v468 = vld [vmem:[#allocation2 + $0x20] sm:$0xff]
    %v469 = vpack.c.bf16 %v466, %v465
    %v470 = vpack.c.bf16 %v468, %v467
    %v471 = vld [vmem:[#allocation8] sm:$0xf]
    %v472 = vld [vmem:[#allocation8 + $0x4] sm:$0xf]
    %v473 = vld [vmem:[#allocation8 + $0x8] sm:$0xf]
    %v474 = vld [vmem:[#allocation8 + $0xc] sm:$0xf]
    %v475 = vld [vmem:[#allocation8 + $0x10] sm:$0xf]
    %v476 = vld [vmem:[#allocation8 + $0x14] sm:$0xf]
    %v477 = vld [vmem:[#allocation8 + $0x18] sm:$0xf]
    %v478 = vld [vmem:[#allocation8 + $0x1c] sm:$0xf]
    %v479 = vld [vmem:[#allocation8 + $0x20] sm:$0xf]
    %v480 = vld [vmem:[#allocation8 + $0x24] sm:$0xf]
    %v481 = vld [vmem:[#allocation8 + $0x28] sm:$0xf]
    %v482 = vld [vmem:[#allocation8 + $0x2c] sm:$0xf]
    %v483 = vld [vmem:[#allocation8 + $0x30] sm:$0xf]
    %v484 = vld [vmem:[#allocation8 + $0x34] sm:$0xf]
    %v485 = vld [vmem:[#allocation8 + $0x38] sm:$0xf]
    %v486 = vld [vmem:[#allocation8 + $0x3c] sm:$0xf]
    %v487 = vld [vmem:[#allocation2 + $0x1] sm:$0xff]
    %v488 = vld [vmem:[#allocation2 + $0x9] sm:$0xff]
    %v489 = vld [vmem:[#allocation2 + $0x19] sm:$0xff]
    %v490 = vld [vmem:[#allocation2 + $0x21] sm:$0xff]
    %v491 = vpack.c.bf16 %v488, %v487
    %v492 = vpack.c.bf16 %v490, %v489
    %s493 = scalar_lea.vmem [#allocation8], 64
    %v494 = vld [vmem:[%s493] sm:$0xf]
    %v495 = vld [vmem:[%s493 + $0x4] sm:$0xf]
    %v496 = vld [vmem:[%s493 + $0x8] sm:$0xf]
    %v497 = vld [vmem:[%s493 + $0xc] sm:$0xf]
    %v498 = vld [vmem:[%s493 + $0x10] sm:$0xf]
    %v499 = vld [vmem:[%s493 + $0x14] sm:$0xf]
    %v500 = vld [vmem:[%s493 + $0x18] sm:$0xf]
    %v501 = vld [vmem:[%s493 + $0x1c] sm:$0xf]
    %v502 = vld [vmem:[%s493 + $0x20] sm:$0xf]
    %v503 = vld [vmem:[%s493 + $0x24] sm:$0xf]
    %v504 = vld [vmem:[%s493 + $0x28] sm:$0xf]
    %v505 = vld [vmem:[%s493 + $0x2c] sm:$0xf]
    %v506 = vld [vmem:[%s493 + $0x30] sm:$0xf]
    %v507 = vld [vmem:[%s493 + $0x34] sm:$0xf]
    %v508 = vld [vmem:[%s493 + $0x38] sm:$0xf]
    %v509 = vld [vmem:[%s493 + $0x3c] sm:$0xf]
    %v526 = vunpack.c.l.b16 %v494
    %v527 = vunpack.c.l.b16 %v495
    %v528 = vunpack.c.l.b16 %v496
    %v529 = vunpack.c.l.b16 %v497
    %v530 = vunpack.c.l.b16 %v498
    %v531 = vunpack.c.l.b16 %v499
    %v532 = vunpack.c.l.b16 %v500
    %v533 = vunpack.c.l.b16 %v501
    %v534 = vunpack.c.l.b16 %v502
    %v535 = vunpack.c.l.b16 %v503
    %v536 = vunpack.c.l.b16 %v504
    %v537 = vunpack.c.l.b16 %v505
    %v538 = vunpack.c.l.b16 %v506
    %v539 = vunpack.c.l.b16 %v507
    %v540 = vunpack.c.l.b16 %v508
    %v541 = vunpack.c.l.b16 %v509
    %v542 = vpack.c.b16 %v527, %v526
    %v543 = vpack.c.b16 %v529, %v528
    %v544 = vpack.c.b16 %v531, %v530
    %v545 = vpack.c.b16 %v533, %v532
    %v546 = vpack.c.b16 %v535, %v534
    %v547 = vpack.c.b16 %v537, %v536
    %v548 = vpack.c.b16 %v539, %v538
    %v549 = vpack.c.b16 %v541, %v540
    %558 = vmatprep.subr.bf16.mxu0 0
    %559 = vmatpush1.bf16.msra.mxu0 %v542
    %560 = vmatprep.subr.bf16.mxu0 0
    %561 = vmatpush1.bf16.msra.mxu0 %v543
    %562 = vmatprep.subr.bf16.mxu0 0
    %563 = vmatpush1.bf16.msra.mxu0 %v544
    %564 = vmatprep.subr.bf16.mxu0 0
    %565 = vmatpush1.bf16.msra.mxu0 %v545
    %566 = vmatprep.subr.bf16.mxu0 0
    %567 = vmatpush1.bf16.msra.mxu0 %v546
    %568 = vmatprep.subr.bf16.mxu0 0
    %569 = vmatpush1.bf16.msra.mxu0 %v547
    %570 = vmatprep.subr.bf16.mxu0 0
    %571 = vmatpush1.bf16.msra.mxu0 %v548
    %572 = vmatprep.subr.bf16.mxu0 0
    %573 = vmatpush1.bf16.msra.mxu0 %v549
    %574 = vmatprep.subr.bf16.mxu0 0
    %575 = vmatpush1.bf16.msra.mxu0 0
    %576 = vmatprep.subr.bf16.mxu0 0
    %577 = vmatpush1.bf16.msra.mxu0 0
    %578 = vmatprep.subr.bf16.mxu0 0
    %579 = vmatpush1.bf16.msra.mxu0 0
    %580 = vmatprep.subr.bf16.mxu0 0
    %581 = vmatpush1.bf16.msra.mxu0 0
    %582 = vmatprep.subr.bf16.mxu0 0
    %583 = vmatpush1.bf16.msra.mxu0 0
    %584 = vmatprep.subr.bf16.mxu0 0
    %585 = vmatpush1.bf16.msra.mxu0 0
    %586 = vmatprep.subr.bf16.mxu0 0
    %587 = vmatpush1.bf16.msra.mxu0 0
    %588 = vmatprep.subr.bf16.mxu0 0
    %589 = vmatpush1.bf16.msra.mxu0 0
    %590 = vmatprep.mubr.bf16.mxu0 0
    %591 = vmatmul.mubr.bf16.gmra.mrb[0].mxu0 %v491
    %v592 = vpop.f32.mrb[0].mxu0
    %v593 = vadd.f32 0.0, %v592
    %v594 = vpop.f32.mrb[0].mxu0
    %v595 = vpop.f32.mrb[0].mxu0
    %v596 = vadd.f32 0.0, %v595
    %v597 = vpop.f32.mrb[0].mxu0
    %598 = vmatprep.mubr.bf16.mxu0 0
    %599 = vmatmul.mubr.bf16.gmra.mrb[0].mxu0 %v492
    %v600 = vpop.f32.mrb[0].mxu0
    %v601 = vadd.f32 0.0, %v600
    %v602 = vpop.f32.mrb[0].mxu0
    %v603 = vpop.f32.mrb[0].mxu0
    %v604 = vadd.f32 0.0, %v603
    %v605 = vpop.f32.mrb[0].mxu0
    %606 = vdwg.mxu0
    %v623 = vunpack.c.l.b16 %v471
    %v624 = vunpack.c.l.b16 %v472
    %v625 = vunpack.c.l.b16 %v473
    %v626 = vunpack.c.l.b16 %v474
    %v627 = vunpack.c.l.b16 %v475
    %v628 = vunpack.c.l.b16 %v476
    %v629 = vunpack.c.l.b16 %v477
    %v630 = vunpack.c.l.b16 %v478
    %v631 = vunpack.c.l.b16 %v479
    %v632 = vunpack.c.l.b16 %v480
    %v633 = vunpack.c.l.b16 %v481
    %v634 = vunpack.c.l.b16 %v482
    %v635 = vunpack.c.l.b16 %v483
    %v636 = vunpack.c.l.b16 %v484
    %v637 = vunpack.c.l.b16 %v485
    %v638 = vunpack.c.l.b16 %v486
    %v639 = vpack.c.b16 %v624, %v623
    %v640 = vpack.c.b16 %v626, %v625
    %v641 = vpack.c.b16 %v628, %v627
    %v642 = vpack.c.b16 %v630, %v629
    %v643 = vpack.c.b16 %v632, %v631
    %v644 = vpack.c.b16 %v634, %v633
    %v645 = vpack.c.b16 %v636, %v635
    %v646 = vpack.c.b16 %v638, %v637
    %655 = vmatprep.subr.bf16.mxu0 0
    %656 = vmatpush1.bf16.msra.mxu0 %v639
    %657 = vmatprep.subr.bf16.mxu0 0
    %658 = vmatpush1.bf16.msra.mxu0 %v640
    %659 = vmatprep.subr.bf16.mxu0 0
    %660 = vmatpush1.bf16.msra.mxu0 %v641
    %661 = vmatprep.subr.bf16.mxu0 0
    %662 = vmatpush1.bf16.msra.mxu0 %v642
    %663 = vmatprep.subr.bf16.mxu0 0
    %664 = vmatpush1.bf16.msra.mxu0 %v643
    %665 = vmatprep.subr.bf16.mxu0 0
    %666 = vmatpush1.bf16.msra.mxu0 %v644
    %667 = vmatprep.subr.bf16.mxu0 0
    %668 = vmatpush1.bf16.msra.mxu0 %v645
    %669 = vmatprep.subr.bf16.mxu0 0
    %670 = vmatpush1.bf16.msra.mxu0 %v646
    %671 = vmatprep.subr.bf16.mxu0 0
    %672 = vmatpush1.bf16.msra.mxu0 0
    %673 = vmatprep.subr.bf16.mxu0 0
    %674 = vmatpush1.bf16.msra.mxu0 0
    %675 = vmatprep.subr.bf16.mxu0 0
    %676 = vmatpush1.bf16.msra.mxu0 0
    %677 = vmatprep.subr.bf16.mxu0 0
    %678 = vmatpush1.bf16.msra.mxu0 0
    %679 = vmatprep.subr.bf16.mxu0 0
    %680 = vmatpush1.bf16.msra.mxu0 0
    %681 = vmatprep.subr.bf16.mxu0 0
    %682 = vmatpush1.bf16.msra.mxu0 0
    %683 = vmatprep.subr.bf16.mxu0 0
    %684 = vmatpush1.bf16.msra.mxu0 0
    %685 = vmatprep.subr.bf16.mxu0 0
    %686 = vmatpush1.bf16.msra.mxu0 0
    %687 = vmatprep.mubr.bf16.mxu0 0
    %688 = vmatmul.mubr.bf16.gmra.mrb[0].mxu0 %v469
    %v689 = vpop.f32.mrb[0].mxu0
    %v690 = vadd.f32 %v593, %v689
    %v691 = vpop.f32.mrb[0].mxu0
    %v692 = vpop.f32.mrb[0].mxu0
    %v693 = vadd.f32 %v596, %v692
    %v694 = vpop.f32.mrb[0].mxu0
    %695 = vmatprep.mubr.bf16.mxu0 0
    %696 = vmatmul.mubr.bf16.gmra.mrb[0].mxu0 %v470
    %v697 = vpop.f32.mrb[0].mxu0
    %v698 = vadd.f32 %v601, %v697
    %v699 = vpop.f32.mrb[0].mxu0
    %v700 = vpop.f32.mrb[0].mxu0
    %v701 = vadd.f32 %v604, %v700
    %v702 = vpop.f32.mrb[0].mxu0
    %703 = vdwg.mxu0
    %v704 = vld [vmem:[#allocation2 + $0x2] sm:$0xff]
    %v705 = vld [vmem:[#allocation2 + $0xa] sm:$0xff]
    %v706 = vld [vmem:[#allocation2 + $0x1a] sm:$0xff]
    %v707 = vld [vmem:[#allocation2 + $0x22] sm:$0xff]
    %v708 = vpack.c.bf16 %v705, %v704
    %v709 = vpack.c.bf16 %v707, %v706
    %s710 = scalar_lea.vmem [#allocation8], 128
    %v711 = vld [vmem:[%s710] sm:$0xf]
    %v712 = vld [vmem:[%s710 + $0x4] sm:$0xf]
    %v713 = vld [vmem:[%s710 + $0x8] sm:$0xf]
    %v714 = vld [vmem:[%s710 + $0xc] sm:$0xf]
    %v715 = vld [vmem:[%s710 + $0x10] sm:$0xf]
    %v716 = vld [vmem:[%s710 + $0x14] sm:$0xf]
    %v717 = vld [vmem:[%s710 + $0x18] sm:$0xf]
    %v718 = vld [vmem:[%s710 + $0x1c] sm:$0xf]
    %v719 = vld [vmem:[%s710 + $0x20] sm:$0xf]
    %v720 = vld [vmem:[%s710 + $0x24] sm:$0xf]
    %v721 = vld [vmem:[%s710 + $0x28] sm:$0xf]
    %v722 = vld [vmem:[%s710 + $0x2c] sm:$0xf]
    %v723 = vld [vmem:[%s710 + $0x30] sm:$0xf]
    %v724 = vld [vmem:[%s710 + $0x34] sm:$0xf]
    %v725 = vld [vmem:[%s710 + $0x38] sm:$0xf]
    %v726 = vld [vmem:[%s710 + $0x3c] sm:$0xf]
    %v743 = vunpack.c.l.b16 %v711
    %v744 = vunpack.c.l.b16 %v712
    %v745 = vunpack.c.l.b16 %v713
    %v746 = vunpack.c.l.b16 %v714
    %v747 = vunpack.c.l.b16 %v715
    %v748 = vunpack.c.l.b16 %v716
    %v749 = vunpack.c.l.b16 %v717
    %v750 = vunpack.c.l.b16 %v718
    %v751 = vunpack.c.l.b16 %v719
    %v752 = vunpack.c.l.b16 %v720
    %v753 = vunpack.c.l.b16 %v721
    %v754 = vunpack.c.l.b16 %v722
    %v755 = vunpack.c.l.b16 %v723
    %v756 = vunpack.c.l.b16 %v724
    %v757 = vunpack.c.l.b16 %v725
    %v758 = vunpack.c.l.b16 %v726
    %v759 = vpack.c.b16 %v744, %v743
    %v760 = vpack.c.b16 %v746, %v745
    %v761 = vpack.c.b16 %v748, %v747
    %v762 = vpack.c.b16 %v750, %v749
    %v763 = vpack.c.b16 %v752, %v751
    %v764 = vpack.c.b16 %v754, %v753
    %v765 = vpack.c.b16 %v756, %v755
    %v766 = vpack.c.b16 %v758, %v757
    %775 = vmatprep.subr.bf16.mxu0 0
    %776 = vmatpush1.bf16.msra.mxu0 %v759
    %777 = vmatprep.subr.bf16.mxu0 0
    %778 = vmatpush1.bf16.msra.mxu0 %v760
    %779 = vmatprep.subr.bf16.mxu0 0
    %780 = vmatpush1.bf16.msra.mxu0 %v761
    %781 = vmatprep.subr.bf16.mxu0 0
    %782 = vmatpush1.bf16.msra.mxu0 %v762
    %783 = vmatprep.subr.bf16.mxu0 0
    %784 = vmatpush1.bf16.msra.mxu0 %v763
    %785 = vmatprep.subr.bf16.mxu0 0
    %786 = vmatpush1.bf16.msra.mxu0 %v764
    %787 = vmatprep.subr.bf16.mxu0 0
    %788 = vmatpush1.bf16.msra.mxu0 %v765
    %789 = vmatprep.subr.bf16.mxu0 0
    %790 = vmatpush1.bf16.msra.mxu0 %v766
    %791 = vmatprep.subr.bf16.mxu0 0
    %792 = vmatpush1.bf16.msra.mxu0 0
    %793 = vmatprep.subr.bf16.mxu0 0
    %794 = vmatpush1.bf16.msra.mxu0 0
    %795 = vmatprep.subr.bf16.mxu0 0
    %796 = vmatpush1.bf16.msra.mxu0 0
    %797 = vmatprep.subr.bf16.mxu0 0
    %798 = vmatpush1.bf16.msra.mxu0 0
    %799 = vmatprep.subr.bf16.mxu0 0
    %800 = vmatpush1.bf16.msra.mxu0 0
    %801 = vmatprep.subr.bf16.mxu0 0
    %802 = vmatpush1.bf16.msra.mxu0 0
    %803 = vmatprep.subr.bf16.mxu0 0
    %804 = vmatpush1.bf16.msra.mxu0 0
    %805 = vmatprep.subr.bf16.mxu0 0
    %806 = vmatpush1.bf16.msra.mxu0 0
    %807 = vmatprep.mubr.bf16.mxu0 0
    %808 = vmatmul.mubr.bf16.gmra.mrb[0].mxu0 %v708
    %v809 = vpop.f32.mrb[0].mxu0
    %v810 = vadd.f32 0.0, %v809
    %v811 = vpop.f32.mrb[0].mxu0
    %v812 = vpop.f32.mrb[0].mxu0
    %v813 = vadd.f32 0.0, %v812
    %v814 = vpop.f32.mrb[0].mxu0
    %815 = vmatprep.mubr.bf16.mxu0 0
    %816 = vmatmul.mubr.bf16.gmra.mrb[0].mxu0 %v709
    %v817 = vpop.f32.mrb[0].mxu0
    %v818 = vadd.f32 0.0, %v817
    %v819 = vpop.f32.mrb[0].mxu0
    %v820 = vpop.f32.mrb[0].mxu0
    %v821 = vadd.f32 0.0, %v820
    %v822 = vpop.f32.mrb[0].mxu0
    %823 = vdwg.mxu0
    %v824 = vadd.f32 %v690, %v810
    %v825 = vadd.f32 %v693, %v813
    %v826 = vadd.f32 %v698, %v818
    %v827 = vadd.f32 %v701, %v821
    %v828 = vld [vmem:[%s4] sm:$0x1]
    %v830 = vlaneseq
    %v831 = vshrl.u32 %v830, 7
    %v832 = vsub.s32 0, %v831
    %v833 = vrot.slane %v828, %v832
    %v835 = vadd.f32 %v824, %v833
    %v836 = vadd.f32 %v825, %v833
    %v837 = vadd.f32 %v826, %v833
    %v838 = vadd.f32 %v827, %v833
    %vm839 = vcmp.gt.f32.partialorder %v835, 0.0
    %vm840 = vcmp.gt.f32.partialorder %v836, 0.0
    %vm841 = vcmp.gt.f32.partialorder %v837, 0.0
    %vm842 = vcmp.gt.f32.partialorder %v838, 0.0
    %v843 = vmul.f32 %v835, 0.8
    %v844 = vmul.f32 %v836, 0.8
    %v845 = vmul.f32 %v837, 0.8
    %v846 = vmul.f32 %v838, 0.8
    %v847 = vsel %vm839, %v835, %v843
    %v848 = vsel %vm840, %v836, %v844
    %v849 = vsel %vm841, %v837, %v845
    %v850 = vsel %vm842, %v838, %v846
    %851 = vst [vmem:[#allocation9] sm:$0xff] %v847
    %852 = vst [vmem:[#allocation9 + $0x8] sm:$0xff] %v848
    %853 = vst [vmem:[#allocation9 + $0x10] sm:$0xff] %v849
    %854 = vst [vmem:[#allocation9 + $0x18] sm:$0xff] %v850
    // Predicated region
    $region34: #{tpu_custom_call.1} parent=1 // pred_check
      _
    $region35: #{tpu_custom_call.1} parent=1 // pred_check_branch
      %856 = sbr.rel (0) target = $region37
    $region36: #{tpu_custom_call.1} parent=1 // pred_region
      %s858 = ssub.s32 512, 512
      %859 = vsyncadd [#allocation5], %s858
      %s860 = sshll.u32 [#allocation9], 4
      %s861 = int_to_ptr.vmem [resolvable:$true] %s860
      %866 = dma.vmem_to_hbm [thread:$0]  %s861, 512, %s5, [#allocation5], 128, 128, 8
    $region37: #{tpu_custom_call.1} parent=1 // pred_fallthru
      _
    // Predicated region
    $region38: #{tpu_custom_call.1} parent=1 // pred_check
      _
    $region39: #{tpu_custom_call.1} parent=1 // pred_check_branch
      %868 = sbr.rel (0) target = $region41
    $region40: #{tpu_custom_call.1} parent=1 // pred_region
      %869 = dma.done [#allocation5], 512
    $region41: #{tpu_custom_call.1} parent=1 // pred_fallthru
      _
    %870 = vsyncpa [#allocation4], 1
    %871 = vsyncpa [#allocation7], 1
    %872 = vsyncpa [#allocation5], 1

</llo_original>
